<compile_context>
chip_gen: v6e
topology: v6e:2x2x1
jax: 0.10.0
libtpu: 0.0.40
codegen_flags: <defaults>
</compile_context>

<pallas_src>
import functools

import jax
import jax.numpy as jnp
from jax.experimental import pallas as pl
from jax.experimental.pallas import tpu as pltpu


def _round_up(x, m):
    return (x + m - 1) // m * m


def _vmem_budget_bytes():
    """Generation-aware VMEM budget (leave headroom for Mosaic internals)."""
    try:
        cap = pltpu.get_tpu_info().vmem_capacity_bytes
    except Exception:
        cap = 64 * 1024 * 1024          # conservative default (v7x-sized)
    return int(min(cap * 0.78, 100 * 1024 * 1024))


# ---------------------------------------------------------------------------
# Kernels
# ---------------------------------------------------------------------------
def _logreg_kernel_wholek(x_ref, w_ref, b_ref, o_ref):
    """Resident-weight path; grid = (batch tiles,).

    x_ref: [TB, D]   w_ref: [D, Cp]   b_ref: [1, Cp]   o_ref: [TB, Cp] (f32)
    """
    logits = jnp.dot(x_ref[...], w_ref[...],
                     preferred_element_type=jnp.float32) + b_ref[...]
    m = jnp.max(logits, axis=-1, keepdims=True)        # stable softmax
    e = jnp.exp(logits - m)
    # Exact division: rows must sum to 1 (approx reciprocal does not guarantee it).
    o_ref[...] = e / jnp.sum(e, axis=-1, keepdims=True)


def _logreg_kernel_ktiled(x_ref, w_ref, b_ref, o_ref):
    """K-tiled reduction; grid = (batch tiles, k tiles), reduction axis last.

    Accumulates straight into the f32 output block (resident across k).
    x_ref: [TB, TK]   w_ref: [TK, Cp]   b_ref: [1, Cp]   o_ref: [TB, Cp] (f32)
    """
    k = pl.program_id(1)

    @pl.when(k == 0)
    def _init():
        o_ref[...] = jnp.zeros_like(o_ref)

    o_ref[...] += jnp.dot(x_ref[...], w_ref[...],
                          preferred_element_type=jnp.float32)

    @pl.when(k == pl.num_programs(1) - 1)
    def _finalize():
        logits = o_ref[...] + b_ref[...]                # broadcast [1, Cp] bias
        m = jnp.max(logits, axis=-1, keepdims=True)     # stable softmax
        e = jnp.exp(logits - m)
        o_ref[...] = e / jnp.sum(e, axis=-1, keepdims=True)


# ---------------------------------------------------------------------------
# Wrapper
# ---------------------------------------------------------------------------
@functools.partial(jax.jit, static_argnames=("block_b", "block_k", "compute_dtype"))
def multinomial_logistic_regression(x, weight, bias, *, block_b=1024,
                                    block_k=512, compute_dtype=jnp.float32):
    """softmax(x @ weight.T + bias, axis=1).

    x:      [B, D]
    weight: [C, D] (PyTorch nn.Linear layout)
    bias:   [C]
    """
    B, D = x.shape
    C = weight.shape[0]
    cdt = jnp.dtype(compute_dtype)
    itemsize = cdt.itemsize

    Cp = _round_up(C, 128)                      # lane-dense class axis
    budget = _vmem_budget_bytes()
    # TODO(synk): for very large num_classes (TB*Cp f32 blocks outgrowing the
    # v7x 64 MiB budget) tile the class axis with a two-pass / online softmax.

    # ---- batch tile --------------------------------------------------------
    TB = min(_round_up(B, 8), block_b)

    def _fits_whole(tb):
        return (D * Cp * itemsize               # resident weight (single DMA)
                + 2 * tb * D * itemsize         # double-buffered x tiles
                + 2 * tb * Cp * 4               # double-buffered out tiles
                + Cp * 4) <= budget

    def _fits_ktiled(tb, tk):
        return (2 * (tb * tk + tk * Cp) * itemsize
                + 2 * tb * Cp * 4 + Cp * 4) <= budget

    if _fits_whole(TB) or _fits_whole(8):
        # Resident-weight path: shrink TB (>=8) only if that is what it takes.
        while not _fits_whole(TB):
            TB = max(TB // 2, 8)
        whole_d = True
        TK, Dp = D, D                           # full-dim block: no D padding
    else:
        whole_d = False
        # Pick a 128-multiple K tile minimizing D padding waste.
        cands = [t for t in (512, 384, 256, 128) if t <= max(block_k, 128)]
        TK = min(cands, key=lambda t: (_round_up(D, t) - D, -t))
        Dp = _round_up(D, TK)
        while not _fits_ktiled(TB, TK) and TB > 8:
            TB = max(TB // 2, 8)

    Bp = _round_up(B, TB)
    n_b = Bp // TB

    # ---- pad only where needed (zero pads contribute nothing to the dot) ---
    xc = x.astype(cdt)
    if (Bp, Dp) != (B, D):
        xc = jnp.pad(xc, ((0, Bp - B), (0, Dp - D)))

    # One-time layout change: [C, D] -> [D, C] (amortized vs. per-tile re-reads).
    wt = weight.astype(cdt).T
    if (Dp, Cp) != (D, C):
        wt = jnp.pad(wt, ((0, Dp - D), (0, Cp - C)))

    bp = bias.astype(jnp.float32)
    if Cp != C:
        # pad classes -> softmax weight exactly 0 (f32 epilogue: exp underflows)
        bp = jnp.pad(bp, (0, Cp - C), constant_values=-1e30)
    bp = bp.reshape(1, Cp)

    # ---- pallas_call -------------------------------------------------------
    if whole_d:
        grid = (n_b,)
        in_specs = [
            pl.BlockSpec((TB, D), lambda i: (i, 0)),       # x tile
            pl.BlockSpec((D, Cp), lambda i: (0, 0)),       # resident weight
            pl.BlockSpec((1, Cp), lambda i: (0, 0)),       # bias
        ]
        out_spec = pl.BlockSpec((TB, Cp), lambda i: (i, 0))
        kernel = _logreg_kernel_wholek
        semantics = ("parallel",)
        bytes_accessed = itemsize * (Bp * D + D * Cp) + 4 * (Cp + Bp * Cp)
    else:
        n_k = Dp // TK
        grid = (n_b, n_k)                                  # reduction axis last
        in_specs = [
            pl.BlockSpec((TB, TK), lambda i, k: (i, k)),   # x tile
            pl.BlockSpec((TK, Cp), lambda i, k: (k, 0)),   # weight tile [D, C]
            pl.BlockSpec((1, Cp), lambda i, k: (0, 0)),    # bias
        ]
        out_spec = pl.BlockSpec((TB, Cp), lambda i, k: (i, 0))
        kernel = _logreg_kernel_ktiled
        semantics = ("parallel", "arbitrary")
        # weight is re-streamed once per batch tile when it is not resident
        bytes_accessed = itemsize * (Bp * Dp + Dp * Cp * n_b) + 4 * (Cp + Bp * Cp)

    out_p = pl.pallas_call(
        kernel,
        out_shape=jax.ShapeDtypeStruct((Bp, Cp), jnp.float32),
        grid_spec=pltpu.PrefetchScalarGridSpec(
            num_scalar_prefetch=0,
            grid=grid,
            in_specs=in_specs,
            out_specs=out_spec,
        ),
        compiler_params=pltpu.CompilerParams(
            dimension_semantics=semantics,
            vmem_limit_bytes=budget),
        cost_estimate=pl.CostEstimate(
            flops=2 * Bp * Dp * Cp,
            transcendentals=Bp * Cp,
            bytes_accessed=int(bytes_accessed)),
    )(xc, wt, bp)

    return out_p[:B, :C]


if __name__ == "__main__":
    key = jax.random.PRNGKey(0)
    B, D, C = 8, 32, 16   # batch, input_size, num_classes

    kx, kw, kb = jax.random.split(key, 3)
    x = jax.random.normal(kx, (B, D), dtype=jnp.float32)
    # Deterministic Linear params (PyTorch layout: weight [C, D], bias [C]).
    bound = 1.0 / jnp.sqrt(D)
    weight = jax.random.uniform(kw, (C, D), minval=-bound, maxval=bound,
                                dtype=jnp.float32)
    bias = jax.random.uniform(kb, (C,), minval=-bound, maxval=bound,
                              dtype=jnp.float32)

    out = multinomial_logistic_regression(x, weight, bias)
    out = jax.block_until_ready(out)

    # Reference check in plain JAX.
    ref = jax.nn.softmax(x @ weight.T + bias, axis=1)
    assert out.shape == (B, C)
    assert jnp.allclose(out, ref, atol=1e-3, rtol=1e-3)
    # Exact softmax division => rows sum to 1 up to f32 rounding.
    assert jnp.allclose(jnp.sum(out, axis=1), 1.0, atol=1e-5)

    print("KERNEL_OK")
</pallas_src>

<mosaic_0001>
module attributes {stable_mosaic.version = 11 : i64} {
  func.func @_logreg_kernel_wholek(%arg0: i32, %arg1: memref<8x32xf32, #tpu.memory_space<vmem>>, %arg2: memref<32x128xf32, #tpu.memory_space<vmem>>, %arg3: memref<1x128xf32, #tpu.memory_space<vmem>>, %arg4: memref<8x128xf32, #tpu.memory_space<vmem>>) attributes {dimension_semantics = [#tpu.dimension_semantics<parallel>], iteration_bounds = array<i64: 1>, scalar_prefetch = 0 : i64, scratch_operands = 0 : i64, tpu.core_type = #tpu.core_type<tc>, window_params = [{transform_indices = @transform_0, window_bounds = array<i64: 8, 32>}, {pipeline_mode = #tpu.pipeline_mode<synchronous>, transform_indices = @transform_1, window_bounds = array<i64: 32, 128>}, {pipeline_mode = #tpu.pipeline_mode<synchronous>, transform_indices = @transform_2, window_bounds = array<i64: 1, 128>}, {transform_indices = @transform_3, window_bounds = array<i64: 8, 128>}]} {
    %c0 = arith.constant 0 : index
    %c0_0 = arith.constant 0 : index
    %0 = vector.load %arg1[%c0, %c0_0] : memref<8x32xf32, #tpu.memory_space<vmem>>, vector<8x32xf32>
    %c0_1 = arith.constant 0 : index
    %c0_2 = arith.constant 0 : index
    %1 = vector.load %arg2[%c0_1, %c0_2] : memref<32x128xf32, #tpu.memory_space<vmem>>, vector<32x128xf32>
    %cst = arith.constant dense<0.000000e+00> : vector<8x128xf32>
    %2 = tpu.matmul %0, %1, %cst {dimension_numbers = #tpu.dot_dimension_numbers<[1], [0], [0], [1], [0, 0, 1, 1], [], []>} : vector<8x32xf32>, vector<32x128xf32>, vector<8x128xf32> -> vector<8x128xf32>
    %c0_3 = arith.constant 0 : index
    %c0_4 = arith.constant 0 : index
    %3 = vector.load %arg3[%c0_3, %c0_4] : memref<1x128xf32, #tpu.memory_space<vmem>>, vector<1x128xf32>
    %4 = vector.broadcast %3 : vector<1x128xf32> to vector<8x128xf32>
    %5 = arith.addf %2, %4 : vector<8x128xf32>
    %cst_5 = arith.constant dense<0xFF800000> : vector<8xf32>
    %6 = vector.multi_reduction <maximumf>, %5, %cst_5 [1] : vector<8x128xf32> to vector<8xf32>
    %7 = vector.shape_cast %6 : vector<8xf32> to vector<8x1xf32>
    %8 = vector.broadcast %7 : vector<8x1xf32> to vector<8x128xf32>
    %9 = arith.subf %5, %8 : vector<8x128xf32>
    %10 = math.exp %9 : vector<8x128xf32>
    %cst_6 = arith.constant dense<0.000000e+00> : vector<8xf32>
    %11 = vector.multi_reduction <add>, %10, %cst_6 [1] : vector<8x128xf32> to vector<8xf32>
    %12 = vector.shape_cast %11 : vector<8xf32> to vector<8x1xf32>
    %13 = vector.broadcast %12 : vector<8x1xf32> to vector<8x128xf32>
    %14 = arith.divf %10, %13 : vector<8x128xf32>
    %c0_7 = arith.constant 0 : index
    %c0_8 = arith.constant 0 : index
    %15 = vector.load %arg4[%c0_7, %c0_8] : memref<8x128xf32, #tpu.memory_space<vmem>>, vector<8x128xf32>
    tpu.vector_store %arg4[%c0_7, %c0_8], %14 {strides = array<i32>} : memref<8x128xf32, #tpu.memory_space<vmem>>, vector<8x128xf32>,
    return
  }
  func.func @transform_0(%arg0: i32) -> (i32, i32) {
    %c0_i32 = arith.constant 0 : i32
    %c0_i32_0 = arith.constant 0 : i32
    return %arg0, %c0_i32 : i32, i32
  }
  func.func @transform_1(%arg0: i32) -> (i32, i32) {
    %c0_i32 = arith.constant 0 : i32
    %c0_i32_0 = arith.constant 0 : i32
    %c0_i32_1 = arith.constant 0 : i32
    return %c0_i32, %c0_i32_0 : i32, i32
  }
  func.func @transform_2(%arg0: i32) -> (i32, i32) {
    %c0_i32 = arith.constant 0 : i32
    %c0_i32_0 = arith.constant 0 : i32
    %c0_i32_1 = arith.constant 0 : i32
    return %c0_i32, %c0_i32_0 : i32, i32
  }
  func.func @transform_3(%arg0: i32) -> (i32, i32) {
    %c0_i32 = arith.constant 0 : i32
    %c0_i32_0 = arith.constant 0 : i32
    return %arg0, %c0_i32 : i32, i32
  }
}

</mosaic_0001>

<llo_original>
// kernel: multinomial_logistic_regression.1
$region0: #{multinomial_logistic_regression.1}
  #allocation0 [shape = 'u32[]', space=smem, size = 0x4, offset = 0x4, fixed_abs, tag = 'smem constant byte address 0x4 - core index']
  #allocation1 [shape = 'u32[144,128]{1,0:T(1,128)}', space=vmem, size = 0x12000, scoped, tag = 'internal scratch']
  %s0 = inlined_call_operand.vmem [shape: f32[8,32], index: 0, kind: input, shape index: {}]
  %s1 = inlined_call_operand.vmem [shape: f32[32,128], index: 1, kind: input, shape index: {}]
  %s2 = inlined_call_operand.vmem [shape: f32[1,128], index: 2, kind: input, shape index: {}]
  %s3 = inlined_call_operand.hbm [shape: f32[8,128], index: 3, kind: output, shape index: {}]
  %s4 = sld [smem:[#allocation0]]
  $region22: #{multinomial_logistic_regression.1} parent=0
    _
  %s6 = ssub.s32 1, %s4
  %s7 = scalar_select 0, %s6, %s4
  $region1: #{multinomial_logistic_regression.1} parent=0
    #allocation2 [shape = 'u8[4096]{0}', space=vmem, size = 0x1000, scoped, tag = 'output window, operand 0, single buffered']
    #allocation3 [shape = 's32[1]{0}', space=sflag, size = 0x4, scoped, tag = 'scoped memory for multinomial_logistic_regression.1']
    %8 = vsyncpa [#allocation3], 0
    // Predicated region
    $region2: #{multinomial_logistic_regression.1} parent=1 // pred_check
      _
    $region3: #{multinomial_logistic_regression.1} parent=1 // pred_check_branch
      %10 = sbr.rel (0) target = $region5
    $region4: #{multinomial_logistic_regression.1} parent=1 // pred_region
      _
    $region5: #{multinomial_logistic_regression.1} parent=1 // pred_fallthru
      _
    // Predicated region
    $region6: #{multinomial_logistic_regression.1} parent=1 // pred_check
      _
    $region7: #{multinomial_logistic_regression.1} parent=1 // pred_check_branch
      %12 = sbr.rel (0) target = $region9
    $region8: #{multinomial_logistic_regression.1} parent=1 // pred_region
      _
    $region9: #{multinomial_logistic_regression.1} parent=1 // pred_fallthru
      _
    // Predicated region
    $region10: #{multinomial_logistic_regression.1} parent=1 // pred_check
      _
    $region11: #{multinomial_logistic_regression.1} parent=1 // pred_check_branch
      %14 = sbr.rel (0) target = $region13
    $region12: #{multinomial_logistic_regression.1} parent=1 // pred_region
      _
    $region13: #{multinomial_logistic_regression.1} parent=1 // pred_fallthru
      _
    %v15 = vld [vmem:[%s0] sm:$0xff]
    %v16 = vld [vmem:[%s1] sm:$0xff]
    %v17 = vld [vmem:[%s1 + $0x8] sm:$0xff]
    %v18 = vld [vmem:[%s1 + $0x10] sm:$0xff]
    %v19 = vld [vmem:[%s1 + $0x18] sm:$0xff]
    %v20 = vld [vmem:[%s2] sm:$0x1]
    %v22 = vlaneseq
    %v23 = vshrl.u32 %v22, 7
    %v24 = vsub.s32 0, %v23
    %v25 = vrot.slane %v20, %v24
    %vm27 = vcmask 261120
    %v29 = vsel %vm27, %v15, 0
    %31 = vmatprep.subr.mxu0 0.0
    %32 = vmatpush1.msra.mxu0 0.0
    %33 = vmatprep.subr.mxu0 0.0
    %34 = vmatpush1.msra.mxu0 0.0
    %35 = vmatprep.subr.mxu0 0.0
    %36 = vmatpush1.msra.mxu0 0.0
    %37 = vmatprep.subr.mxu0 0.0
    %38 = vmatpush1.msra.mxu0 0.0
    %39 = vmatprep.subr.mxu0 0.0
    %40 = vmatpush1.msra.mxu0 0.0
    %41 = vmatprep.subr.mxu0 0.0
    %42 = vmatpush1.msra.mxu0 0.0
    %43 = vmatprep.subr.mxu0 0.0
    %44 = vmatpush1.msra.mxu0 0.0
    %45 = vmatprep.subr.mxu0 0.0
    %46 = vmatpush1.msra.mxu0 0.0
    %47 = vmatprep.subr.mxu0 0.0
    %48 = vmatpush1.msra.mxu0 0.0
    %49 = vmatprep.subr.mxu0 0.0
    %50 = vmatpush1.msra.mxu0 0.0
    %51 = vmatprep.subr.mxu0 0.0
    %52 = vmatpush1.msra.mxu0 0.0
    %53 = vmatprep.subr.mxu0 0.0
    %54 = vmatpush1.msra.mxu0 0.0
    %55 = vmatprep.subr.mxu0 0.0
    %56 = vmatpush1.msra.mxu0 %v19
    %57 = vmatprep.subr.mxu0 0.0
    %58 = vmatpush1.msra.mxu0 %v18
    %59 = vmatprep.subr.mxu0 0.0
    %60 = vmatpush1.msra.mxu0 %v17
    %61 = vmatprep.subr.mxu0 0.0
    %62 = vmatpush1.msra.mxu0 %v16
    %63 = vmatprep.subr.mxu0 0.0
    %64 = vmatpush2.msra.mxu0 0.0
    %65 = vmatprep.subr.mxu0 0.0
    %66 = vmatpush2.msra.mxu0 0.0
    %67 = vmatprep.subr.mxu0 0.0
    %68 = vmatpush2.msra.mxu0 0.0
    %69 = vmatprep.subr.mxu0 0.0
    %70 = vmatpush2.msra.mxu0 0.0
    %71 = vmatprep.subr.mxu0 0.0
    %72 = vmatpush2.msra.mxu0 0.0
    %73 = vmatprep.subr.mxu0 0.0
    %74 = vmatpush2.msra.mxu0 0.0
    %75 = vmatprep.subr.mxu0 0.0
    %76 = vmatpush2.msra.mxu0 0.0
    %77 = vmatprep.subr.mxu0 0.0
    %78 = vmatpush2.msra.mxu0 0.0
    %79 = vmatprep.subr.mxu0 0.0
    %80 = vmatpush2.msra.mxu0 0.0
    %81 = vmatprep.subr.mxu0 0.0
    %82 = vmatpush2.msra.mxu0 0.0
    %83 = vmatprep.subr.mxu0 0.0
    %84 = vmatpush2.msra.mxu0 0.0
    %85 = vmatprep.subr.mxu0 0.0
    %86 = vmatpush2.msra.mxu0 0.0
    %87 = vmatprep.subr.mxu0 0.0
    %88 = vmatpush2.msra.mxu0 0.0
    %89 = vmatprep.subr.mxu0 0.0
    %90 = vmatpush2.msra.mxu0 0.0
    %91 = vmatprep.subr.mxu0 0.0
    %92 = vmatpush2.msra.mxu0 0.0
    %93 = vmatprep.subr.mxu0 0.0
    %94 = vmatpush2.msra.mxu0 0.0
    %95 = vmatprep.mubr.f32.mxu0 0.0
    %96 = vmatmul.mubr.f32.gmra.mxu0 %v29
    %v97 = vpop.f32.mrf.mxu0
    %v98 = vadd.f32 %v25, %v97
    %v99 = vpop.f32.mrf.mxu0
    %100 = vdwg.mxu0
    %101 = vmax.xlane.f32.xlu0 %v98
    %v102 = vpop.xlane.xlu0 %101
    %v103 = vsub.f32 %v98, %v102
    %v104 = vmul.f32 %v103, 1.442695
    %v105 = vpow.pop %v104
    %106 = vadd.xlane.f32.xlu0 %v105
    %v107 = vpop.xlane.xlu0 %106
    %v108 = vrcp.pop %v107
    %v109 = vmul.f32 %v105, %v108
    %110 = vst [vmem:[#allocation2] sm:$0xff] %v109
    // Predicated region
    $region14: #{multinomial_logistic_regression.1} parent=1 // pred_check
      _
    $region15: #{multinomial_logistic_regression.1} parent=1 // pred_check_branch
      %112 = sbr.rel (0) target = $region17
    $region16: #{multinomial_logistic_regression.1} parent=1 // pred_region
      %s114 = ssub.s32 128, 128
      %115 = vsyncadd [#allocation3], %s114
      %s117 = sshll.u32 [#allocation2], 4
      %s118 = int_to_ptr.vmem [resolvable:$true] %s117
      %120 = dma.vmem_to_hbm [thread:$0]  %s118, 128, %s3, [#allocation3]
    $region17: #{multinomial_logistic_regression.1} parent=1 // pred_fallthru
      _
    // Predicated region
    $region18: #{multinomial_logistic_regression.1} parent=1 // pred_check
      _
    $region19: #{multinomial_logistic_regression.1} parent=1 // pred_check_branch
      %122 = sbr.rel (0) target = $region21
    $region20: #{multinomial_logistic_regression.1} parent=1 // pred_region
      %123 = dma.done [#allocation3], 128
    $region21: #{multinomial_logistic_regression.1} parent=1 // pred_fallthru
      _
    %124 = vsyncpa [#allocation3], 1

</llo_original>
